<compile_context>
chip_gen: v5e
topology: v5e:2x2
jax: 0.10.0
libtpu: 0.0.40
codegen_flags: <defaults>
</compile_context>

<pallas_src>
import jax
import jax.numpy as jnp
from jax.experimental import pallas as pl
from jax.experimental.pallas import tpu as pltpu


# ----------------------------------------------------------------------------
# Kernel:  one grid step = TN images x TM spatial positions.
#   x_ref: (TN, Cin, TM)   w_ref: (Cout, Cin)   b_ref: (Cout, 1)
#   o_ref: (TN, Cout, TM)
# ----------------------------------------------------------------------------
def _pointwise_kernel(x_ref, w_ref, b_ref, o_ref):
    w = w_ref[...]
    b = b_ref[...]
    # TN is a (small) static block dimension -> unrolled loop of MXU matmuls.
    for n in range(x_ref.shape[0]):
        acc = jnp.dot(w, x_ref[n], preferred_element_type=jnp.float32)
        o_ref[n] = (acc + b).astype(o_ref.dtype)


# ----------------------------------------------------------------------------
# Generation-aware VMEM budgeting.
# ----------------------------------------------------------------------------
def _vmem_config():
    """Returns (per_step_budget_bytes, vmem_limit_bytes) based on the chip."""
    cap = 128 * 1024 * 1024
    try:
        info = pltpu.get_tpu_info()
        got = getattr(info, "vmem_capacity_bytes", None)
        if got:
            cap = int(got)
    except Exception:
        pass
    if cap >= 100 * 1024 * 1024:
        # v5e / v6e: 128 MiB physical VMEM -> large double-buffered tiles.
        budget = 24 * 1024 * 1024
        limit = 80 * 1024 * 1024
    else:
        # v7x: 64 MiB physical per TC -> stay conservative.
        budget = 12 * 1024 * 1024
        limit = 48 * 1024 * 1024
    return budget, min(limit, cap)


def _divisors(n):
    return [d for d in range(1, n + 1) if n % d == 0]


def _choose_tiles(N, M_pad, Cin, Cout, budget_bytes, elem_bytes):
    """Pick (TN, TM): TM a 128-multiple divisor of M_pad, TN a divisor of N."""
    tm_options = [d * 128 for d in _divisors(M_pad // 128)]      # ascending
    tn_options = _divisors(N)                                    # ascending

    bytes_per_col = 2 * (Cin + Cout) * elem_bytes                # double-buffered in+out
    fixed = elem_bytes * (Cout * Cin + Cout)                     # resident weights/bias

    def fits(tn, tm):
        return fixed + bytes_per_col * tn * tm <= budget_bytes

    def steps(tn, tm):
        return (N // tn) * (M_pad // tm)

    # Largest lane tile within the budget (amortizes per-grid-step overhead).
    TM = max([t for t in tm_options if fits(1, t)] or [128])

    # Small-spatial layers: pack several batch images per step to keep lanes
    # and DMAs full (otherwise per-step overhead dominates).
    TN = 1
    if TM == M_pad and M_pad < 512:
        target = max(1, 512 // M_pad)
        cand = [t for t in tn_options if t <= target and fits(t, TM)]
        if cand:
            TN = cand[-1]

    # Keep >= 2 grid steps when there is enough work so a 2-TC chip (v7x) can
    # shard the parallel axes across both TensorCores (harmless on v5e/v6e).
    if steps(TN, TM) < 2 and N * M_pad > TN * TM:
        if TN > 1:
            TN = max([t for t in tn_options if t < TN] or [1])
        elif TM > 128:
            TM = max([t for t in tm_options if t < TM] or [128])

    return TN, TM


# ----------------------------------------------------------------------------
# Pointwise 1x1 conv with bias, NCHW in / NCHW out.
#   x_nchw: [N, Cin, H, W]   w_oi: [Cout, Cin]   b_o: [Cout]
# ----------------------------------------------------------------------------
def pointwise_conv(x_nchw, w_oi, b_o):
    N, Cin, H, W = x_nchw.shape
    Cout = w_oi.shape[0]
    M = H * W
    M_pad = pl.cdiv(M, 128) * 128                # lane-dense, unmasked stores
    elem_bytes = jnp.dtype(x_nchw.dtype).itemsize

    budget_bytes, vmem_limit = _vmem_config()
    TN, TM = _choose_tiles(N, M_pad, Cin, Cout, budget_bytes, elem_bytes)

    x_3d = x_nchw.reshape(N, Cin, M)             # pure reshape, no transpose
    if M_pad != M:
        x_3d = jnp.pad(x_3d, ((0, 0), (0, 0), (0, M_pad - M)))
    b_2d = b_o.reshape(Cout, 1)

    cost = pl.CostEstimate(
        flops=2 * N * M_pad * Cin * Cout,
        transcendentals=0,
        bytes_accessed=elem_bytes * (N * M_pad * (Cin + Cout) + Cin * Cout + Cout),
    )

    out_3d = pl.pallas_call(
        _pointwise_kernel,
        out_shape=jax.ShapeDtypeStruct((N, Cout, M_pad), x_nchw.dtype),
        grid=(N // TN, M_pad // TM),
        in_specs=[
            pl.BlockSpec((TN, Cin, TM), lambda n, m: (n, 0, m)),   # activations (tiled)
            pl.BlockSpec((Cout, Cin), lambda n, m: (0, 0)),        # weights (resident)
            pl.BlockSpec((Cout, 1), lambda n, m: (0, 0)),          # bias (resident)
        ],
        out_specs=pl.BlockSpec((TN, Cout, TM), lambda n, m: (n, 0, m)),
        compiler_params=pltpu.CompilerParams(
            dimension_semantics=("parallel", "parallel"),
            vmem_limit_bytes=vmem_limit,
        ),
        cost_estimate=cost,
    )(x_3d, w_oi, b_2d)

    if M_pad != M:
        out_3d = out_3d[:, :, :M]
    return out_3d.reshape(N, Cout, H, W)         # pure reshape back to NCHW


# ----------------------------------------------------------------------------
# Module wrapper (mirrors Depthwise_Separable_Conv.forward).
# The reference forward computes the depthwise conv and then overwrites it with
# pointwise(x); the depthwise result is dead work and is intentionally skipped.
# ----------------------------------------------------------------------------
def depthwise_separable_conv_forward(x, params):
    return pointwise_conv(x, params["pw_weight"], params["pw_bias"])


def init_params(key, in_channels, out_channels, kernels_per_layer=1):
    assert kernels_per_layer == 1
    k1, k2, k3 = jax.random.split(key, 3)
    # nn.Conv2d shapes: depthwise weight [Cin*k, 1, 3, 3] -> [Cin, 3, 3] (unused/dead);
    # pointwise weight [Cout, Cin*k, 1, 1] -> [Cout, Cin]; pointwise bias [Cout].
    return {
        "dw_weight": jax.random.normal(k1, (in_channels, 3, 3), jnp.float32) * 0.1,
        "pw_weight": jax.random.normal(k2, (out_channels, in_channels), jnp.float32) * 0.1,
        "pw_bias": jax.random.normal(k3, (out_channels,), jnp.float32) * 0.1,
    }


if __name__ == "__main__":
    key = jax.random.PRNGKey(0)
    kx, kp = jax.random.split(key)

    N, Cin, H, W = 2, 4, 16, 16
    Cout = 8
    x = jax.random.normal(kx, (N, Cin, H, W), jnp.float32)
    params = init_params(kp, Cin, Cout)

    out = depthwise_separable_conv_forward(x, params)
    out = jax.block_until_ready(out)
    assert out.shape == (N, Cout, H, W), out.shape

    # Correctness check against plain JAX (module output == 1x1 conv + bias).
    ref = (jnp.einsum("nchw,oc->nohw", x, params["pw_weight"])
           + params["pw_bias"][None, :, None, None])
    assert jnp.allclose(out, ref, atol=1e-5, rtol=1e-5)

    # Exercise a non-128-multiple / small-spatial shape path as well.
    x2 = jax.random.normal(kx, (4, Cin, 6, 6), jnp.float32)
    out2 = jax.block_until_ready(
        pointwise_conv(x2, params["pw_weight"], params["pw_bias"]))
    ref2 = (jnp.einsum("nchw,oc->nohw", x2, params["pw_weight"])
            + params["pw_bias"][None, :, None, None])
    assert jnp.allclose(out2, ref2, atol=1e-5, rtol=1e-5)

    print("KERNEL_OK")
</pallas_src>

<mosaic_0001>
module attributes {stable_mosaic.version = 11 : i64} {
  func.func @_pointwise_kernel(%arg0: i32, %arg1: i32, %arg2: memref<2x4x256xf32, #tpu.memory_space<vmem>>, %arg3: memref<8x4xf32, #tpu.memory_space<vmem>>, %arg4: memref<8x1xf32, #tpu.memory_space<vmem>>, %arg5: memref<2x8x256xf32, #tpu.memory_space<vmem>>) attributes {dimension_semantics = [#tpu.dimension_semantics<parallel>, #tpu.dimension_semantics<parallel>], iteration_bounds = array<i64: 1, 1>, scalar_prefetch = 0 : i64, scratch_operands = 0 : i64, tpu.core_type = #tpu.core_type<tc>, window_params = [{transform_indices = @transform_0, window_bounds = array<i64: 2, 4, 256>}, {pipeline_mode = #tpu.pipeline_mode<synchronous>, transform_indices = @transform_1, window_bounds = array<i64: 8, 4>}, {pipeline_mode = #tpu.pipeline_mode<synchronous>, transform_indices = @transform_2, window_bounds = array<i64: 8, 1>}, {transform_indices = @transform_3, window_bounds = array<i64: 2, 8, 256>}]} {
    %c0 = arith.constant 0 : index
    %c0_0 = arith.constant 0 : index
    %0 = vector.load %arg3[%c0, %c0_0] : memref<8x4xf32, #tpu.memory_space<vmem>>, vector<8x4xf32>
    %c0_1 = arith.constant 0 : index
    %c0_2 = arith.constant 0 : index
    %1 = vector.load %arg4[%c0_1, %c0_2] : memref<8x1xf32, #tpu.memory_space<vmem>>, vector<8x1xf32>
    %c0_3 = arith.constant 0 : index
    %c0_4 = arith.constant 0 : index
    %c0_5 = arith.constant 0 : index
    %2 = vector.load %arg2[%c0_3, %c0_4, %c0_5] : memref<2x4x256xf32, #tpu.memory_space<vmem>>, vector<1x4x256xf32>
    %3 = vector.shape_cast %2 : vector<1x4x256xf32> to vector<4x256xf32>
    %cst = arith.constant dense<0.000000e+00> : vector<8x256xf32>
    %4 = tpu.matmul %0, %3, %cst {dimension_numbers = #tpu.dot_dimension_numbers<[1], [0], [0], [1], [0, 0, 1, 1], [], []>} : vector<8x4xf32>, vector<4x256xf32>, vector<8x256xf32> -> vector<8x256xf32>
    %5 = vector.broadcast %1 : vector<8x1xf32> to vector<8x256xf32>
    %6 = arith.addf %4, %5 : vector<8x256xf32>
    %c0_6 = arith.constant 0 : index
    %c0_7 = arith.constant 0 : index
    %c0_8 = arith.constant 0 : index
    %7 = vector.load %arg5[%c0_6, %c0_7, %c0_8] : memref<2x8x256xf32, #tpu.memory_space<vmem>>, vector<1x8x256xf32>
    %8 = vector.shape_cast %7 : vector<1x8x256xf32> to vector<8x256xf32>
    %9 = vector.shape_cast %6 : vector<8x256xf32> to vector<1x8x256xf32>
    tpu.vector_store %arg5[%c0_6, %c0_7, %c0_8], %9 {strides = array<i32>} : memref<2x8x256xf32, #tpu.memory_space<vmem>>, vector<1x8x256xf32>,
    %c1 = arith.constant 1 : index
    %c0_9 = arith.constant 0 : index
    %c0_10 = arith.constant 0 : index
    %10 = vector.load %arg2[%c1, %c0_9, %c0_10] : memref<2x4x256xf32, #tpu.memory_space<vmem>>, vector<1x4x256xf32>
    %11 = vector.shape_cast %10 : vector<1x4x256xf32> to vector<4x256xf32>
    %cst_11 = arith.constant dense<0.000000e+00> : vector<8x256xf32>
    %12 = tpu.matmul %0, %11, %cst_11 {dimension_numbers = #tpu.dot_dimension_numbers<[1], [0], [0], [1], [0, 0, 1, 1], [], []>} : vector<8x4xf32>, vector<4x256xf32>, vector<8x256xf32> -> vector<8x256xf32>
    %13 = vector.broadcast %1 : vector<8x1xf32> to vector<8x256xf32>
    %14 = arith.addf %12, %13 : vector<8x256xf32>
    %c1_12 = arith.constant 1 : index
    %c0_13 = arith.constant 0 : index
    %c0_14 = arith.constant 0 : index
    %15 = vector.load %arg5[%c1_12, %c0_13, %c0_14] : memref<2x8x256xf32, #tpu.memory_space<vmem>>, vector<1x8x256xf32>
    %16 = vector.shape_cast %15 : vector<1x8x256xf32> to vector<8x256xf32>
    %17 = vector.shape_cast %14 : vector<8x256xf32> to vector<1x8x256xf32>
    tpu.vector_store %arg5[%c1_12, %c0_13, %c0_14], %17 {strides = array<i32>} : memref<2x8x256xf32, #tpu.memory_space<vmem>>, vector<1x8x256xf32>,
    return
  }
  func.func @transform_0(%arg0: i32, %arg1: i32) -> (i32, i32, i32) {
    %c0_i32 = arith.constant 0 : i32
    %c0_i32_0 = arith.constant 0 : i32
    return %arg0, %c0_i32, %arg1 : i32, i32, i32
  }
  func.func @transform_1(%arg0: i32, %arg1: i32) -> (i32, i32) {
    %c0_i32 = arith.constant 0 : i32
    %c0_i32_0 = arith.constant 0 : i32
    %c0_i32_1 = arith.constant 0 : i32
    return %c0_i32, %c0_i32_0 : i32, i32
  }
  func.func @transform_2(%arg0: i32, %arg1: i32) -> (i32, i32) {
    %c0_i32 = arith.constant 0 : i32
    %c0_i32_0 = arith.constant 0 : i32
    %c0_i32_1 = arith.constant 0 : i32
    return %c0_i32, %c0_i32_0 : i32, i32
  }
  func.func @transform_3(%arg0: i32, %arg1: i32) -> (i32, i32, i32) {
    %c0_i32 = arith.constant 0 : i32
    %c0_i32_0 = arith.constant 0 : i32
    return %arg0, %c0_i32, %arg1 : i32, i32, i32
  }
}

</mosaic_0001>

<llo_original>
// kernel: tpu_custom_call.1
$region0: #{tpu_custom_call.1}
  #allocation0 [shape = 'u32[]', space=smem, size = 0x4, offset = 0x4, fixed_abs, tag = 'smem constant byte address 0x4 - core index']
  #allocation1 [shape = 'u32[72,128]{1,0:T(1,128)}', space=vmem, size = 0x9000, scoped, tag = 'internal scratch']
  %s0 = inlined_call_operand.vmem [shape: f32[2,4,256], index: 0, kind: input, shape index: {}]
  %s1 = inlined_call_operand.vmem [shape: f32[8,4], index: 1, kind: input, shape index: {}]
  %s2 = inlined_call_operand.vmem [shape: f32[8,1], index: 2, kind: input, shape index: {}]
  %s3 = inlined_call_operand.hbm [shape: f32[2,8,256], index: 3, kind: output, shape index: {}]
  %s4 = sld [smem:[#allocation0]]
  $region22: #{tpu_custom_call.1} parent=0
    _
  %s6 = ssub.s32 1, %s4
  %s7 = scalar_select 0, %s6, %s4
  $region1: #{tpu_custom_call.1} parent=0
    #allocation2 [shape = 'u8[16384]{0}', space=vmem, size = 0x4000, scoped, tag = 'output window, operand 0, single buffered']
    #allocation3 [shape = 's32[1]{0}', space=sflag, size = 0x4, scoped, tag = 'scoped memory for tpu_custom_call.1']
    %8 = vsyncpa [#allocation3], 0
    // Predicated region
    $region2: #{tpu_custom_call.1} parent=1 // pred_check
      _
    $region3: #{tpu_custom_call.1} parent=1 // pred_check_branch
      %10 = sbr.rel (0) target = $region5
    $region4: #{tpu_custom_call.1} parent=1 // pred_region
      _
    $region5: #{tpu_custom_call.1} parent=1 // pred_fallthru
      _
    // Predicated region
    $region6: #{tpu_custom_call.1} parent=1 // pred_check
      _
    $region7: #{tpu_custom_call.1} parent=1 // pred_check_branch
      %12 = sbr.rel (0) target = $region9
    $region8: #{tpu_custom_call.1} parent=1 // pred_region
      _
    $region9: #{tpu_custom_call.1} parent=1 // pred_fallthru
      _
    // Predicated region
    $region10: #{tpu_custom_call.1} parent=1 // pred_check
      _
    $region11: #{tpu_custom_call.1} parent=1 // pred_check_branch
      %14 = sbr.rel (0) target = $region13
    $region12: #{tpu_custom_call.1} parent=1 // pred_region
      _
    $region13: #{tpu_custom_call.1} parent=1 // pred_fallthru
      _
    %v15 = vld [vmem:[%s1] sm:$0xff]
    %v16 = vld [vmem:[%s2] sm:$0xff]
    %v17 = vld [vmem:[%s0] sm:$0xff]
    %19 = vset.pattern.permute.xlu0 0
    %20 = vperm.xlu0 %19, %v16
    %v21 = vpop.permute.xlu0 %20
    %24 = vst [vmem:[#allocation1] ss:$2 sm:$0xff] %v17
    %v25 = vld.sshfl [vmem:[#allocation1] sm:$0xff pattern:$0x75316420]
    %v26 = vld.sshfl [vmem:[#allocation1 + $0x8] sm:$0xff pattern:$0x75316420]
    %vm27 = vcmask 31744
    %v29 = vsel %vm27, %v15, 0
    %vm31 = vcmask 1043456
    %v32 = vsel %vm31, %v25, 0
    %v34 = vsel %vm31, %v26, 0
    %36 = vmatpush.msra.mxu0 0.0
    %37 = vmatpush.msra.mxu0 0.0
    %38 = vmatpush.msra.mxu0 0.0
    %39 = vmatpush.msra.mxu0 0.0
    %40 = vmatpush.msra.mxu0 0.0
    %41 = vmatpush.msra.mxu0 0.0
    %42 = vmatpush.msra.mxu0 0.0
    %43 = vmatpush.msra.mxu0 0.0
    %44 = vmatpush.msra.mxu0 0.0
    %45 = vmatpush.msra.mxu0 0.0
    %46 = vmatpush.msra.mxu0 0.0
    %47 = vmatpush.msra.mxu0 0.0
    %48 = vmatpush.msra.mxu0 0.0
    %49 = vmatpush.msra.mxu0 0.0
    %50 = vmatpush.msra.mxu0 0.0
    %51 = vmatpush.msra.mxu0 %v32
    %52 = vmatmul.f32.gmra.mxu0 %v29
    %v53 = vpop.f32.mrf.mxu0
    %v54 = vadd.f32 %v21, %v53
    %55 = vdwg.mxu0
    %56 = vmatpush.msra.mxu0 0.0
    %57 = vmatpush.msra.mxu0 0.0
    %58 = vmatpush.msra.mxu0 0.0
    %59 = vmatpush.msra.mxu0 0.0
    %60 = vmatpush.msra.mxu0 0.0
    %61 = vmatpush.msra.mxu0 0.0
    %62 = vmatpush.msra.mxu0 0.0
    %63 = vmatpush.msra.mxu0 0.0
    %64 = vmatpush.msra.mxu0 0.0
    %65 = vmatpush.msra.mxu0 0.0
    %66 = vmatpush.msra.mxu0 0.0
    %67 = vmatpush.msra.mxu0 0.0
    %68 = vmatpush.msra.mxu0 0.0
    %69 = vmatpush.msra.mxu0 0.0
    %70 = vmatpush.msra.mxu0 0.0
    %71 = vmatpush.msra.mxu0 %v34
    %72 = vmatmul.f32.gmra.mxu0 %v29
    %v73 = vpop.f32.mrf.mxu0
    %v74 = vadd.f32 %v21, %v73
    %75 = vdwg.mxu0
    %76 = vst [vmem:[#allocation2] sm:$0xff] %v54
    %77 = vst [vmem:[#allocation2 + $0x8] sm:$0xff] %v74
    %s78 = scalar_lea.vmem %s0, 8
    %v79 = vld [vmem:[%s78] sm:$0xff]
    %81 = vst [vmem:[#allocation1] ss:$2 sm:$0xff] %v79
    %v82 = vld.sshfl [vmem:[#allocation1] sm:$0xff pattern:$0x75316420]
    %v83 = vld.sshfl [vmem:[#allocation1 + $0x8] sm:$0xff pattern:$0x75316420]
    %v84 = vsel %vm31, %v82, 0
    %v86 = vsel %vm31, %v83, 0
    %88 = vmatpush.msra.mxu0 0.0
    %89 = vmatpush.msra.mxu0 0.0
    %90 = vmatpush.msra.mxu0 0.0
    %91 = vmatpush.msra.mxu0 0.0
    %92 = vmatpush.msra.mxu0 0.0
    %93 = vmatpush.msra.mxu0 0.0
    %94 = vmatpush.msra.mxu0 0.0
    %95 = vmatpush.msra.mxu0 0.0
    %96 = vmatpush.msra.mxu0 0.0
    %97 = vmatpush.msra.mxu0 0.0
    %98 = vmatpush.msra.mxu0 0.0
    %99 = vmatpush.msra.mxu0 0.0
    %100 = vmatpush.msra.mxu0 0.0
    %101 = vmatpush.msra.mxu0 0.0
    %102 = vmatpush.msra.mxu0 0.0
    %103 = vmatpush.msra.mxu0 %v84
    %104 = vmatmul.f32.gmra.mxu0 %v29
    %v105 = vpop.f32.mrf.mxu0
    %v106 = vadd.f32 %v21, %v105
    %107 = vdwg.mxu0
    %108 = vmatpush.msra.mxu0 0.0
    %109 = vmatpush.msra.mxu0 0.0
    %110 = vmatpush.msra.mxu0 0.0
    %111 = vmatpush.msra.mxu0 0.0
    %112 = vmatpush.msra.mxu0 0.0
    %113 = vmatpush.msra.mxu0 0.0
    %114 = vmatpush.msra.mxu0 0.0
    %115 = vmatpush.msra.mxu0 0.0
    %116 = vmatpush.msra.mxu0 0.0
    %117 = vmatpush.msra.mxu0 0.0
    %118 = vmatpush.msra.mxu0 0.0
    %119 = vmatpush.msra.mxu0 0.0
    %120 = vmatpush.msra.mxu0 0.0
    %121 = vmatpush.msra.mxu0 0.0
    %122 = vmatpush.msra.mxu0 0.0
    %123 = vmatpush.msra.mxu0 %v86
    %124 = vmatmul.f32.gmra.mxu0 %v29
    %v125 = vpop.f32.mrf.mxu0
    %v126 = vadd.f32 %v21, %v125
    %127 = vdwg.mxu0
    %s128 = scalar_lea.vmem [#allocation2], 16
    %129 = vst [vmem:[%s128] sm:$0xff] %v106
    %130 = vst [vmem:[%s128 + $0x8] sm:$0xff] %v126
    // Predicated region
    $region14: #{tpu_custom_call.1} parent=1 // pred_check
      _
    $region15: #{tpu_custom_call.1} parent=1 // pred_check_branch
      %132 = sbr.rel (0) target = $region17
    $region16: #{tpu_custom_call.1} parent=1 // pred_region
      %134 = vsyncadd [#allocation3], 0
      %s135 = sshll.u32 [#allocation2], 4
      %s136 = int_to_ptr.vmem [resolvable:$true] %s135
      %s137 = sshll.u32 %s3, 4
      %s138 = int_to_ptr.hbm [resolvable:$true] %s137
      %143 = dma.vmem_to_hbm [thread:$0]  %s136, 512, %s138, [#allocation3], 256, 256, 16
    $region17: #{tpu_custom_call.1} parent=1 // pred_fallthru
      _
    // Predicated region
    $region18: #{tpu_custom_call.1} parent=1 // pred_check
      _
    $region19: #{tpu_custom_call.1} parent=1 // pred_check_branch
      %145 = sbr.rel (0) target = $region21
    $region20: #{tpu_custom_call.1} parent=1 // pred_region
      %147 = dma.done [#allocation3], 512
    $region21: #{tpu_custom_call.1} parent=1 // pred_fallthru
      _
    %148 = vsyncpa [#allocation3], 1

</llo_original>
